<compile_context>
chip_gen: v7x
topology: tpu7x:2x2x1
jax: 0.10.0
libtpu: 0.0.40
codegen_flags: <defaults>
</compile_context>

<pallas_src>
import functools

import jax
import jax.numpy as jnp
from jax import lax
from jax.experimental import pallas as pl
from jax.experimental.pallas import tpu as pltpu

LANES = 128
TARGET_TILE_ROWS = 1024   # 1024x128 f32 = 512 KiB per input block (2 MiB double-buffered
                          # across both inputs) -- safe for v5e/v6e/v7x scoped-VMEM defaults.
NUM_SLICES_MAX = 2        # megacore split for v7x; degenerates to 1 sequential slice elsewhere.


def _ipow(x, k: int):
    """x**k for small static non-negative integer k via VPU multiplies."""
    if k == 0:
        return jnp.ones_like(x)
    acc = x
    for _ in range(k - 1):
        acc = acc * x
    return acc


def _focal_loss_kernel(gamma, n_valid, tile_rows, steps_per_slice,
                       x_ref, t_ref, o_ref):
    """Accumulate an (8, 128) partial sum of -focal(x, t) per grid slice."""
    c = pl.program_id(0)   # parallel slice (TensorCore on v7x)
    i = pl.program_id(1)   # reduction step within the slice

    @pl.when(i == 0)
    def _():
        o_ref[...] = jnp.zeros_like(o_ref)

    p = x_ref[...].astype(jnp.float32)
    t = t_ref[...].astype(jnp.float32)
    q = 1.0 - p

    if isinstance(gamma, int):
        # Integer gamma (default 2): keep the powers on the 4-wide VPU.
        p_pow = _ipow(p, gamma)
        q_pow = _ipow(q, gamma)
    else:
        # Non-integer gamma: falls back to pow (exp/log on the EUP).
        p_pow = p ** gamma
        q_pow = q ** gamma

    # Same formula as the PyTorch reference (log(p)/log(1-p) can hit -inf for
    # saturated p, exactly like the reference).
    loss = t * q_pow * jnp.log(p) + (1.0 - t) * p_pow * jnp.log(q)
    neg = -loss

    # Validity mask via iota against the true element count.  Covers the ragged
    # last tile and any clamped overflow step of the parallel split.  This is a
    # handful of VPU ops per element, hidden under the HBM DMA.
    blk = c * steps_per_slice + i
    row0 = blk * tile_rows
    rid = row0 + lax.broadcasted_iota(jnp.int32, (tile_rows, LANES), 0)
    cid = lax.broadcasted_iota(jnp.int32, (tile_rows, LANES), 1)
    neg = jnp.where(rid * LANES + cid < n_valid, neg, 0.0)

    # Sublane-aligned partial reduction: (tile_rows,128) -> (8,128) is pure
    # vreg-wise adds; the final cross-lane reduce is deferred to the wrapper.
    o_ref[...] += neg.reshape(tile_rows // 8, 8, LANES).sum(axis=0)


def binary_focal_loss(inputs: jax.Array, targets: jax.Array, gamma: float = 2.0):
    """Mean binary focal loss, matching the PyTorch reference semantics."""
    assert inputs.shape == targets.shape
    n = inputs.size

    x = inputs.reshape(-1)
    t = targets.reshape(-1)
    if x.dtype != jnp.float32:
        x = x.astype(jnp.float32)
    if t.dtype != jnp.float32:
        t = t.astype(jnp.float32)

    rows = pl.cdiv(n, LANES)
    padded = rows * LANES
    if padded != n:
        # Only the (<128 element) ragged lane tail needs padding; it is masked
        # out in-kernel, so any finite value works.
        x = jnp.pad(x, (0, padded - n), constant_values=0.5)
        t = jnp.pad(t, (0, padded - n), constant_values=0.0)
    x2 = x.reshape(rows, LANES)
    t2 = t.reshape(rows, LANES)

    # Adaptive tile: big (near-roofline) for large inputs, shrinks for small ones.
    tile_rows = min(TARGET_TILE_ROWS, max(8, (rows // 8) * 8))
    num_blocks = pl.cdiv(rows, tile_rows)
    num_slices = min(NUM_SLICES_MAX, num_blocks)
    steps = pl.cdiv(num_blocks, num_slices)

    # Static Python scalar for gamma (no captured traced constants); integer
    # exponents get the multiply-only path in the kernel.
    g = float(gamma)
    gamma_static = int(g) if g.is_integer() else g

    def in_map(c, i):
        # Clamp overflow steps of the last slice onto the final data block; the
        # in-kernel iota mask (which uses the *unclamped* position) zeroes them.
        blk = jnp.minimum(c * steps + i, num_blocks - 1)
        return (blk, 0)

    kernel = functools.partial(_focal_loss_kernel, gamma_static, n, tile_rows, steps)
    tile_spec = pl.BlockSpec((tile_rows, LANES), in_map)

    partials = pl.pallas_call(
        kernel,
        out_shape=jax.ShapeDtypeStruct((num_slices * 8, LANES), jnp.float32),
        grid_spec=pltpu.PrefetchScalarGridSpec(
            num_scalar_prefetch=0,
            grid=(num_slices, steps),
            in_specs=[tile_spec, tile_spec],
            out_specs=pl.BlockSpec((8, LANES), lambda c, i: (c, 0)),
        ),
        compiler_params=pltpu.CompilerParams(
            dimension_semantics=("parallel", "arbitrary")),
    )(x2, t2)

    # Final cross-lane reduce + mean (tiny op) in plain JAX.
    return jnp.sum(partials) / jnp.float32(n)


def _reference(inputs, targets, gamma=2.0):
    loss = (targets * (1 - inputs) ** gamma * jnp.log(inputs)
            + (1 - targets) * inputs ** gamma * jnp.log(1 - inputs))
    return jnp.mean(-loss)


if __name__ == "__main__":
    key = jax.random.PRNGKey(0)
    k1, k2 = jax.random.split(key)

    # Small NCHW-shaped predictions in (0, 1) and binary targets.
    shape = (2, 4, 16, 16)
    logits = jax.random.normal(k1, shape, dtype=jnp.float32)
    inputs = jax.nn.sigmoid(logits)                       # probabilities in (0,1)
    targets = (jax.random.uniform(k2, shape) > 0.5).astype(jnp.float32)

    out = binary_focal_loss(inputs, targets, gamma=2.0)
    out = jax.block_until_ready(out)

    ref = _reference(inputs, targets, gamma=2.0)
    assert jnp.allclose(out, ref, rtol=1e-5, atol=1e-6), (out, ref)

    print("KERNEL_OK")
</pallas_src>

<mosaic_0001>
module attributes {stable_mosaic.version = 11 : i64} {
  func.func @_focal_loss_kernel(%arg0: i32, %arg1: i32, %arg2: memref<16x128xf32, #tpu.memory_space<vmem>>, %arg3: memref<16x128xf32, #tpu.memory_space<vmem>>, %arg4: memref<8x128xf32, #tpu.memory_space<vmem>>) attributes {dimension_semantics = [#tpu.dimension_semantics<parallel>, #tpu.dimension_semantics<arbitrary>], iteration_bounds = array<i64: 1, 1>, scalar_prefetch = 0 : i64, scratch_operands = 0 : i64, tpu.core_type = #tpu.core_type<tc>, window_params = [{transform_indices = @transform_0, window_bounds = array<i64: 16, 128>}, {transform_indices = @transform_1, window_bounds = array<i64: 16, 128>}, {transform_indices = @transform_2, window_bounds = array<i64: 8, 128>}]} {
    %c0_i32 = arith.constant 0 : i32
    %0 = arith.cmpi eq, %arg1, %c0_i32 : i32
    %1 = arith.extui %0 : i1 to i32
    %c0_i32_0 = arith.constant 0 : i32
    %2 = arith.cmpi ne, %1, %c0_i32_0 : i32
    scf.if %2 {
      %cst_12 = arith.constant 0.000000e+00 : f32
      %39 = vector.broadcast %cst_12 : f32 to vector<8x128xf32>
      %c0_13 = arith.constant 0 : index
      %c0_14 = arith.constant 0 : index
      %40 = vector.load %arg4[%c0_13, %c0_14] : memref<8x128xf32, #tpu.memory_space<vmem>>, vector<8x128xf32>
      tpu.vector_store %arg4[%c0_13, %c0_14], %39 {strides = array<i32>} : memref<8x128xf32, #tpu.memory_space<vmem>>, vector<8x128xf32>,
    } else {
    }
    %c0 = arith.constant 0 : index
    %c0_1 = arith.constant 0 : index
    %3 = vector.load %arg2[%c0, %c0_1] : memref<16x128xf32, #tpu.memory_space<vmem>>, vector<16x128xf32>
    %c0_2 = arith.constant 0 : index
    %c0_3 = arith.constant 0 : index
    %4 = vector.load %arg3[%c0_2, %c0_3] : memref<16x128xf32, #tpu.memory_space<vmem>>, vector<16x128xf32>
    %cst = arith.constant 1.000000e+00 : f32
    %5 = vector.broadcast %cst : f32 to vector<16x128xf32>
    %6 = arith.subf %5, %3 : vector<16x128xf32>
    %7 = arith.mulf %3, %3 : vector<16x128xf32>
    %8 = arith.mulf %6, %6 : vector<16x128xf32>
    %9 = arith.mulf %4, %8 : vector<16x128xf32>
    %10 = math.log %3 : vector<16x128xf32>
    %11 = arith.mulf %9, %10 : vector<16x128xf32>
    %cst_4 = arith.constant 1.000000e+00 : f32
    %12 = vector.broadcast %cst_4 : f32 to vector<16x128xf32>
    %13 = arith.subf %12, %4 : vector<16x128xf32>
    %14 = arith.mulf %13, %7 : vector<16x128xf32>
    %15 = math.log %6 : vector<16x128xf32>
    %16 = arith.mulf %14, %15 : vector<16x128xf32>
    %17 = arith.addf %11, %16 : vector<16x128xf32>
    %cst_5 = arith.constant 0.000000e+00 : f32
    %18 = vector.broadcast %cst_5 : f32 to vector<16x128xf32>
    %19 = arith.subf %18, %17 : vector<16x128xf32>
    %c1_i32 = arith.constant 1 : i32
    %20 = arith.muli %arg0, %c1_i32 : i32
    %21 = arith.addi %20, %arg1 : i32
    %c16_i32 = arith.constant 16 : i32
    %22 = arith.muli %21, %c16_i32 : i32
    %23 = tpu.iota {dimensions = array<i32: 0>} : vector<16x128xi32>
    %24 = vector.broadcast %22 : i32 to vector<16x128xi32>
    %25 = arith.addi %24, %23 : vector<16x128xi32>
    %26 = tpu.iota {dimensions = array<i32: 1>} : vector<16x128xi32>
    %c128_i32 = arith.constant 128 : i32
    %27 = vector.broadcast %c128_i32 : i32 to vector<16x128xi32>
    %28 = arith.muli %25, %27 : vector<16x128xi32>
    %29 = arith.addi %28, %26 : vector<16x128xi32>
    %c2048_i32 = arith.constant 2048 : i32
    %30 = vector.broadcast %c2048_i32 : i32 to vector<16x128xi32>
    %31 = arith.cmpi slt, %29, %30 : vector<16x128xi32>
    %cst_6 = arith.constant 0.000000e+00 : f32
    %32 = vector.broadcast %cst_6 : f32 to vector<16x128xf32>
    %33 = arith.select %31, %19, %32 : vector<16x128xi1>, vector<16x128xf32>
    %c0_7 = arith.constant 0 : index
    %c0_8 = arith.constant 0 : index
    %34 = vector.load %arg4[%c0_7, %c0_8] : memref<8x128xf32, #tpu.memory_space<vmem>>, vector<8x128xf32>
    %35 = vector.shape_cast %33 : vector<16x128xf32> to vector<2x8x128xf32>
    %cst_9 = arith.constant dense<0.000000e+00> : vector<8x128xf32>
    %36 = vector.multi_reduction <add>, %35, %cst_9 [0] : vector<2x8x128xf32> to vector<8x128xf32>
    %37 = arith.addf %34, %36 : vector<8x128xf32>
    %c0_10 = arith.constant 0 : index
    %c0_11 = arith.constant 0 : index
    %38 = vector.load %arg4[%c0_10, %c0_11] : memref<8x128xf32, #tpu.memory_space<vmem>>, vector<8x128xf32>
    tpu.vector_store %arg4[%c0_10, %c0_11], %37 {strides = array<i32>} : memref<8x128xf32, #tpu.memory_space<vmem>>, vector<8x128xf32>,
    return
  }
  func.func @transform_0(%arg0: i32, %arg1: i32) -> (i32, i32) {
    %c1_i32 = arith.constant 1 : i32
    %0 = arith.muli %arg0, %c1_i32 : i32
    %1 = arith.addi %0, %arg1 : i32
    %c0_i32 = arith.constant 0 : i32
    %2 = arith.minsi %1, %c0_i32 : i32
    %c0_i32_0 = arith.constant 0 : i32
    %c0_i32_1 = arith.constant 0 : i32
    return %2, %c0_i32_0 : i32, i32
  }
  func.func @transform_1(%arg0: i32, %arg1: i32) -> (i32, i32) {
    %c1_i32 = arith.constant 1 : i32
    %0 = arith.muli %arg0, %c1_i32 : i32
    %1 = arith.addi %0, %arg1 : i32
    %c0_i32 = arith.constant 0 : i32
    %2 = arith.minsi %1, %c0_i32 : i32
    %c0_i32_0 = arith.constant 0 : i32
    %c0_i32_1 = arith.constant 0 : i32
    return %2, %c0_i32_0 : i32, i32
  }
  func.func @transform_2(%arg0: i32, %arg1: i32) -> (i32, i32) {
    %c0_i32 = arith.constant 0 : i32
    %c0_i32_0 = arith.constant 0 : i32
    return %arg0, %c0_i32 : i32, i32
  }
}

</mosaic_0001>

<llo_original>
// kernel: tpu_custom_call.1
$region0: #{tpu_custom_call.1}
  #allocation0 [shape = 'u32[]', space=smem, size = 0x4, offset = 0x4, fixed_abs, tag = 'smem constant byte address 0x4 - core index']
  #allocation1 [shape = 'u32[144,128]{1,0:T(1,128)}', space=vmem, size = 0x12000, scoped, tag = 'internal scratch']
  %s0 = inlined_call_operand.hbm [shape: f32[16,128], index: 0, kind: input, shape index: {}]
  %s1 = inlined_call_operand.hbm [shape: f32[16,128], index: 1, kind: input, shape index: {}]
  %s2 = inlined_call_operand.hbm [shape: f32[8,128], index: 2, kind: output, shape index: {}]
  %s3 = sld [smem:[#allocation0]]
  $region30: #{tpu_custom_call.1} parent=0
    _
  %s5 = ssub.s32 1, %s3
  %s6 = scalar_select 0, %s5, %s3
  $region1: #{tpu_custom_call.1} parent=0
    #allocation2 [shape = 'u8[8192]{0}', space=vmem, size = 0x2000, scoped, tag = 'input window, operand 0, single buffered']
    #allocation3 [shape = 's32[1]{0}', space=sflag, size = 0x4, scoped, tag = 'scoped memory for tpu_custom_call.1']
    #allocation4 [shape = 's32[1]{0}', space=sflag, size = 0x4, scoped, tag = 'scoped memory for tpu_custom_call.1']
    #allocation5 [shape = 'u8[8192]{0}', space=vmem, size = 0x2000, scoped, tag = 'input window, operand 1, single buffered']
    #allocation6 [shape = 's32[1]{0}', space=sflag, size = 0x4, scoped, tag = 'scoped memory for tpu_custom_call.1']
    #allocation7 [shape = 'u8[4096]{0}', space=vmem, size = 0x1000, scoped, tag = 'output window, operand 0, single buffered']
    %7 = vsyncpa [#allocation3], 0
    %8 = vsyncpa [#allocation6], 0
    %9 = vsyncpa [#allocation4], 0
    // Predicated region
    $region2: #{tpu_custom_call.1} parent=1 // pred_check
      _
    $region3: #{tpu_custom_call.1} parent=1 // pred_check_branch
      %11 = sbr.rel (0) target = $region5
    $region4: #{tpu_custom_call.1} parent=1 // pred_region
      %s12 = sadd.s32 0, 0
      %p13 = scmp.lt.s32.totalorder %s12, 0
      %s14 = scalar_select %p13, %s12, 0
      %s15 = smul.u32 2, %s14
      %s17 = ssub.s32 256, 256
      %18 = vsyncadd [#allocation3], %s17
      %s19 = smul.addr %s15, 128
      %s20 = scalar_lea.hbm %s0, %s19
      %s21 = sshll.u32 [#allocation2], 4
      %s22 = int_to_ptr.vmem [resolvable:$true] %s21
      %27 = dma.hbm_to_vmem [thread:$0]  %s20, 256, %s22, [#allocation3], 128, 128, 8
    $region5: #{tpu_custom_call.1} parent=1 // pred_fallthru
      _
    // Predicated region
    $region6: #{tpu_custom_call.1} parent=1 // pred_check
      _
    $region7: #{tpu_custom_call.1} parent=1 // pred_check_branch
      %29 = sbr.rel (0) target = $region9
    $region8: #{tpu_custom_call.1} parent=1 // pred_region
      %s30 = sadd.s32 0, 0
      %p31 = scmp.lt.s32.totalorder %s30, 0
      %s32 = scalar_select %p31, %s30, 0
      %s33 = smul.u32 2, %s32
      %s35 = ssub.s32 256, 256
      %36 = vsyncadd [#allocation6], %s35
      %s37 = smul.addr %s33, 128
      %s38 = scalar_lea.hbm %s1, %s37
      %s39 = sshll.u32 [#allocation5], 4
      %s40 = int_to_ptr.vmem [resolvable:$true] %s39
      %45 = dma.hbm_to_vmem [thread:$0]  %s38, 256, %s40, [#allocation6], 128, 128, 8
    $region9: #{tpu_custom_call.1} parent=1 // pred_fallthru
      _
    // Predicated region
    $region10: #{tpu_custom_call.1} parent=1 // pred_check
      _
    $region11: #{tpu_custom_call.1} parent=1 // pred_check_branch
      %47 = sbr.rel (0) target = $region13
    $region12: #{tpu_custom_call.1} parent=1 // pred_region
      %48 = dma.done [#allocation3], 256
    $region13: #{tpu_custom_call.1} parent=1 // pred_fallthru
      _
    // Predicated region
    $region14: #{tpu_custom_call.1} parent=1 // pred_check
      _
    $region15: #{tpu_custom_call.1} parent=1 // pred_check_branch
      %50 = sbr.rel (0) target = $region17
    $region16: #{tpu_custom_call.1} parent=1 // pred_region
      %51 = dma.done [#allocation6], 256
    $region17: #{tpu_custom_call.1} parent=1 // pred_fallthru
      _
    %s52 = sadd.s32 0, 0
    %p53 = scmp.lt.s32.totalorder %s52, 0
    %s54 = scalar_select %p53, %s52, 0
    %s55 = smul.u32 2, %s54
    %s56 = sadd.s32 0, 0
    %p57 = scmp.lt.s32.totalorder %s56, 0
    %s58 = scalar_select %p57, %s56, 0
    %s59 = smul.u32 2, %s58
    %p60 = scmp.eq.s32.totalorder 0, 0
    // Predicated region
    $region18: #{tpu_custom_call.1} parent=1 // pred_check
      %p61 = pneg %p60
    $region19: #{tpu_custom_call.1} parent=1 // pred_check_branch
      %63 = sbr.rel (%p61) target = $region21
    $region20: #{tpu_custom_call.1} parent=1 // pred_region
      %64 = vst [vmem:[#allocation7] sm:$0xff] 0.0
    $region21: #{tpu_custom_call.1} parent=1 // pred_fallthru
      _
    %v65 = vld [vmem:[#allocation2] sm:$0xff]
    %v66 = vld [vmem:[#allocation2 + $0x8] sm:$0xff]
    %v67 = vld [vmem:[#allocation5] sm:$0xff]
    %v68 = vld [vmem:[#allocation5 + $0x8] sm:$0xff]
    %v69 = vsub.f32 1.0, %v65
    %v70 = vsub.f32 1.0, %v66
    %v71 = vmul.f32 %v65, %v65
    %v72 = vmul.f32 %v66, %v66
    %v73 = vmul.f32 %v69, %v69
    %v74 = vmul.f32 %v70, %v70
    %v75 = vmul.f32 %v67, %v73
    %v76 = vmul.f32 %v68, %v74
    %v77 = vlog2.pop %v65
    %v78 = vmul.f32 %v77, 0.6931472
    %v79 = vlog2.pop %v66
    %v80 = vmul.f32 %v79, 0.6931472
    %v81 = vmul.f32 %v75, %v78
    %v82 = vmul.f32 %v76, %v80
    %v83 = vsub.f32 1.0, %v67
    %v84 = vsub.f32 1.0, %v68
    %v85 = vmul.f32 %v83, %v71
    %v86 = vmul.f32 %v84, %v72
    %v87 = vlog2.pop %v69
    %v88 = vmul.f32 %v87, 0.6931472
    %v89 = vlog2.pop %v70
    %v90 = vmul.f32 %v89, 0.6931472
    %v91 = vmul.f32 %v85, %v88
    %v92 = vmul.f32 %v86, %v90
    %v93 = vadd.f32 %v81, %v91
    %v94 = vadd.f32 %v82, %v92
    %v95 = vsub.f32 0.0, %v93
    %v96 = vsub.f32 0.0, %v94
    %s97 = sadd.s32 0, 0
    %s98 = smul.u32 %s97, 16
    %v99 = vlaneseq
    %v100 = vshrl.u32 %v99, 7
    %v101 = vadd.s32 %v100, 8
    %v102 = vstv %s98
    %v103 = vadd.s32 %v102, %v100
    %v104 = vadd.s32 %v102, %v101
    %v105 = vlaneseq
    %v106 = vand.u32 %v105, 127
    %v107 = vmul.u32 %v103, 128
    %v108 = vmul.u32 %v104, 128
    %v109 = vadd.s32 %v107, %v106
    %v110 = vadd.s32 %v108, %v106
    %vm111 = vcmp.lt.s32.totalorder %v109, 2048
    %vm112 = vcmp.lt.s32.totalorder %v110, 2048
    %v113 = vsel %vm111, %v95, 0.0
    %v114 = vsel %vm112, %v96, 0.0
    %v115 = vld [vmem:[#allocation7] sm:$0xff]
    %v116 = vadd.f32 %v113, %v114
    %v117 = vadd.f32 %v115, %v116
    %118 = vst [vmem:[#allocation7] sm:$0xff] %v117
    // Predicated region
    $region22: #{tpu_custom_call.1} parent=1 // pred_check
      _
    $region23: #{tpu_custom_call.1} parent=1 // pred_check_branch
      %120 = sbr.rel (0) target = $region25
    $region24: #{tpu_custom_call.1} parent=1 // pred_region
      %s122 = ssub.s32 128, 128
      %123 = vsyncadd [#allocation4], %s122
      %s125 = sshll.u32 [#allocation7], 4
      %s126 = int_to_ptr.vmem [resolvable:$true] %s125
      %128 = dma.vmem_to_hbm [thread:$0]  %s126, 128, %s2, [#allocation4]
    $region25: #{tpu_custom_call.1} parent=1 // pred_fallthru
      _
    // Predicated region
    $region26: #{tpu_custom_call.1} parent=1 // pred_check
      _
    $region27: #{tpu_custom_call.1} parent=1 // pred_check_branch
      %130 = sbr.rel (0) target = $region29
    $region28: #{tpu_custom_call.1} parent=1 // pred_region
      %131 = dma.done [#allocation4], 128
    $region29: #{tpu_custom_call.1} parent=1 // pred_fallthru
      _
    %132 = vsyncpa [#allocation3], 1
    %133 = vsyncpa [#allocation6], 1
    %134 = vsyncpa [#allocation4], 1

</llo_original>
